<compile_context>
chip_gen: v5e
topology: v5e:2x2
jax: 0.10.0
libtpu: 0.0.40
codegen_flags: <defaults>
</compile_context>

<pallas_src>
import functools

import jax
import jax.numpy as jnp
from jax.experimental import pallas as pl
from jax.experimental.pallas import tpu as pltpu

_LANE = 128


def _dice_loss_kernel(n_classes, softmax, has_pad,
                      score_ref, labels_ref, out_ref):
    """Grid = (B, n_tiles).

    score_ref  : VMEM (1, C, tile_rows, 128)        -- native dtype, widened here
    labels_ref : VMEM (1, tile_rows, 128) bf16/f32  -- padded pixels carry -1
    out_ref    : VMEM (1, 3*C, 128) f32             -- per-batch lane-resolved
                 partial sums: rows [0,C)=intersect, [C,2C)=y_sum, [2C,3C)=z_sum
    """
    t = pl.program_id(1)

    labels = labels_ref[0]                                  # (tile_rows, 128)

    if softmax:
        # Fused, numerically-stable softmax over the class-resident block.
        # Per-class ref reads are cheap VMEM loads; exp is recomputed in the
        # per-class pass below (EUP slot, essentially free vs. HBM DMA).
        m = score_ref[0, 0].astype(jnp.float32)
        for i in range(1, n_classes):
            m = jnp.maximum(m, score_ref[0, i].astype(jnp.float32))
        denom = jnp.zeros_like(m)
        for i in range(n_classes):
            denom = denom + jnp.exp(score_ref[0, i].astype(jnp.float32) - m)
        inv_denom = 1.0 / denom
        if has_pad:
            # Padded pixels were score-padded with 0 -> softmax would give 1/C
            # and pollute z_sum; their labels are -1, so mask them out.
            valid = labels >= jnp.asarray(0, labels.dtype)

    inter_parts = []
    y_parts = []
    z_parts = []
    for i in range(n_classes):                               # static unroll
        s = score_ref[0, i].astype(jnp.float32)              # (tile_rows, 128)
        if softmax:
            s = jnp.exp(s - m) * inv_denom
            if has_pad:
                s = jnp.where(valid, s, 0.0)
        # One-hot of class i via exact equality (valid for integer-valued
        # labels, same as the reference); padded -1 labels never match.
        mask = labels == jnp.asarray(i, labels.dtype)
        # Sublane-axis reductions only (cheap); cross-lane reduce happens in
        # the JAX finalize on the tiny partial-sum output.
        inter_parts.append(
            jnp.sum(jnp.where(mask, s, 0.0), axis=0, keepdims=True))   # (1,128)
        y_parts.append(
            jnp.sum(mask.astype(jnp.float32), axis=0, keepdims=True))  # (1,128)
        z_parts.append(jnp.sum(s * s, axis=0, keepdims=True))          # (1,128)

    update = jnp.concatenate(inter_parts + y_parts + z_parts, axis=0)  # (3C,128)

    @pl.when(t == 0)
    def _init():
        out_ref[...] = jnp.zeros_like(out_ref)

    out_ref[...] = out_ref[...] + update[None, :, :]


def dice_loss(inputs, target, n_classes, weight=None, softmax=False,
              max_tile_rows=2048):
    """Pallas equivalent of DiceLoss.forward.

    inputs : (B, C, H, W) float scores (NCHW, like the PyTorch module)
    target : (B, 1, H, W) class labels
    """
    B, C, H, W = inputs.shape
    assert C == n_classes, "predict & target shape do not match"
    HW = H * W

    if weight is None:
        weight = [1.0] * n_classes
    weight = jnp.asarray(weight, jnp.float32)
    assert weight.shape == (n_classes,), "weight length must equal n_classes"

    # Scores stay narrow in HBM (bf16 stays bf16); widened to f32 in-kernel.
    if inputs.dtype not in (jnp.float32, jnp.bfloat16):
        inputs = inputs.astype(jnp.float32)

    # Labels narrow: bf16 is exact for integer class ids < 256.
    label_dtype = jnp.bfloat16 if n_classes <= 256 else jnp.float32

    # ---- pixel-axis tiling: lane-dense (rows, 128) tiles, rows % 16 == 0 ----
    n_rows_raw = -(-HW // _LANE)
    num_tiles = max(1, -(-n_rows_raw // max_tile_rows))
    tile_rows = -(-n_rows_raw // num_tiles)
    tile_rows = ((tile_rows + 15) // 16) * 16          # bf16 packing granule
    n_rows = tile_rows * num_tiles
    hw_pad = n_rows * _LANE - HW

    # Free reshapes only (no transpose): the class axis lives inside the block.
    score = inputs.reshape(B, C, HW)
    labels = target.reshape(B, HW).astype(label_dtype)
    if hw_pad:
        # score pads with 0; labels pad with -1 (matches no class).
        score = jnp.pad(score, ((0, 0), (0, 0), (0, hw_pad)))
        labels = jnp.pad(labels, ((0, 0), (0, hw_pad)), constant_values=-1.0)
    score = score.reshape(B, C, n_rows, _LANE)
    labels = labels.reshape(B, n_rows, _LANE)

    kernel = functools.partial(_dice_loss_kernel, n_classes, bool(softmax),
                               hw_pad > 0)

    partial_sums = pl.pallas_call(
        kernel,
        out_shape=jax.ShapeDtypeStruct((B, 3 * n_classes, _LANE), jnp.float32),
        grid_spec=pltpu.PrefetchScalarGridSpec(
            num_scalar_prefetch=0,
            grid=(B, num_tiles),                    # tile (reduce) axis innermost
            in_specs=[
                # scores: whole class axis resident per (batch, tile) block.
                pl.BlockSpec((1, C, tile_rows, _LANE),
                             lambda b, t: (b, 0, t, 0)),
                # labels: one narrow tile per (batch, tile).
                pl.BlockSpec((1, tile_rows, _LANE),
                             lambda b, t: (b, t, 0)),
            ],
            # Per-batch lane-dense partial sums; block stays resident across t.
            out_specs=pl.BlockSpec((1, 3 * n_classes, _LANE),
                                   lambda b, t: (b, 0, 0)),
        ),
        compiler_params=pltpu.CompilerParams(
            # Batch axis has independent output blocks -> safe to shard across
            # TensorCores (v7x); tile axis accumulates -> arbitrary.
            dimension_semantics=("parallel", "arbitrary"),
        ),
    )(score, labels)

    # Tiny finalize in plain JAX: cross-lane + cross-batch reduce, dice formula,
    # weighted mean (keeps the kernel free of scalar/XLU chains and 2-TC safe).
    psum = jnp.sum(partial_sums, axis=(0, 2))            # (3C,)
    intersect = psum[:n_classes]
    y_sum = psum[n_classes:2 * n_classes]
    z_sum = psum[2 * n_classes:]
    smooth = jnp.float32(1e-5)
    dice = 1.0 - (2.0 * intersect + smooth) / (z_sum + y_sum + smooth)
    return jnp.sum(dice * weight) / n_classes


def _dice_loss_reference(inputs, target, n_classes, weight=None, softmax=False):
    """Plain-JAX reference mirroring the PyTorch module."""
    if softmax:
        inputs = jax.nn.softmax(inputs, axis=1)
    if weight is None:
        weight = [1.0] * n_classes
    labels = target[:, 0].astype(jnp.float32)            # (B, H, W)
    smooth = 1e-5
    loss = 0.0
    for i in range(n_classes):
        s = inputs[:, i].astype(jnp.float32)
        t = (labels == float(i)).astype(jnp.float32)
        intersect = jnp.sum(s * t)
        y_sum = jnp.sum(t * t)
        z_sum = jnp.sum(s * s)
        dice = 1.0 - (2.0 * intersect + smooth) / (z_sum + y_sum + smooth)
        loss = loss + dice * weight[i]
    return loss / n_classes


if __name__ == "__main__":
    B, C, H, W = 2, 4, 16, 16
    key = jax.random.PRNGKey(0)
    k1, k2 = jax.random.split(key)

    inputs = jax.random.normal(k1, (B, C, H, W), dtype=jnp.float32)
    target = jax.random.randint(k2, (B, 1, H, W), 0, C).astype(jnp.float32)

    loss = dice_loss(inputs, target, n_classes=C, softmax=False)
    loss = jax.block_until_ready(loss)
    ref = _dice_loss_reference(inputs, target, n_classes=C, softmax=False)
    assert jnp.allclose(loss, ref, rtol=1e-5, atol=1e-5), (loss, ref)

    # fused-softmax path + non-uniform class weights
    w = [0.5, 1.0, 2.0, 1.5]
    loss2 = dice_loss(inputs, target, n_classes=C, weight=w, softmax=True)
    loss2 = jax.block_until_ready(loss2)
    ref2 = _dice_loss_reference(inputs, target, n_classes=C, weight=w,
                                softmax=True)
    assert jnp.allclose(loss2, ref2, rtol=1e-5, atol=1e-5), (loss2, ref2)

    print("KERNEL_OK")
</pallas_src>

<mosaic_0001>
module attributes {stable_mosaic.version = 11 : i64} {
  func.func @_dice_loss_kernel(%arg0: i32, %arg1: i32, %arg2: memref<1x4x16x128xf32, #tpu.memory_space<vmem>>, %arg3: memref<1x16x128xbf16, #tpu.memory_space<vmem>>, %arg4: memref<1x12x128xf32, #tpu.memory_space<vmem>>) attributes {dimension_semantics = [#tpu.dimension_semantics<parallel>, #tpu.dimension_semantics<arbitrary>], iteration_bounds = array<i64: 2, 1>, scalar_prefetch = 0 : i64, scratch_operands = 0 : i64, tpu.core_type = #tpu.core_type<tc>, window_params = [{transform_indices = @transform_0, window_bounds = array<i64: 1, 4, 16, 128>}, {transform_indices = @transform_1, window_bounds = array<i64: 1, 16, 128>}, {transform_indices = @transform_2, window_bounds = array<i64: 1, 12, 128>}]} {
    %c0 = arith.constant 0 : index
    %c0_0 = arith.constant 0 : index
    %c0_1 = arith.constant 0 : index
    %0 = vector.load %arg3[%c0, %c0_0, %c0_1] : memref<1x16x128xbf16, #tpu.memory_space<vmem>>, vector<1x16x128xbf16>
    %1 = vector.shape_cast %0 : vector<1x16x128xbf16> to vector<16x128xbf16>
    %c0_2 = arith.constant 0 : index
    %c0_3 = arith.constant 0 : index
    %c0_4 = arith.constant 0 : index
    %c0_5 = arith.constant 0 : index
    %2 = vector.load %arg2[%c0_2, %c0_3, %c0_4, %c0_5] : memref<1x4x16x128xf32, #tpu.memory_space<vmem>>, vector<1x1x16x128xf32>
    %3 = vector.shape_cast %2 : vector<1x1x16x128xf32> to vector<16x128xf32>
    %cst = arith.constant 0.000000e+00 : bf16
    %4 = vector.broadcast %cst : bf16 to vector<16x128xbf16>
    %5 = arith.cmpf oeq, %1, %4 : vector<16x128xbf16>
    %cst_6 = arith.constant 0.000000e+00 : f32
    %6 = vector.broadcast %cst_6 : f32 to vector<16x128xf32>
    %7 = arith.select %5, %3, %6 : vector<16x128xi1>, vector<16x128xf32>
    %cst_7 = arith.constant dense<0.000000e+00> : vector<128xf32>
    %8 = vector.multi_reduction <add>, %7, %cst_7 [0] : vector<16x128xf32> to vector<128xf32>
    %9 = vector.shape_cast %8 : vector<128xf32> to vector<1x128xf32>
    %10 = arith.extui %5 : vector<16x128xi1> to vector<16x128xi32>
    %11 = arith.sitofp %10 : vector<16x128xi32> to vector<16x128xf32>
    %cst_8 = arith.constant dense<0.000000e+00> : vector<128xf32>
    %12 = vector.multi_reduction <add>, %11, %cst_8 [0] : vector<16x128xf32> to vector<128xf32>
    %13 = vector.shape_cast %12 : vector<128xf32> to vector<1x128xf32>
    %14 = arith.mulf %3, %3 : vector<16x128xf32>
    %cst_9 = arith.constant dense<0.000000e+00> : vector<128xf32>
    %15 = vector.multi_reduction <add>, %14, %cst_9 [0] : vector<16x128xf32> to vector<128xf32>
    %16 = vector.shape_cast %15 : vector<128xf32> to vector<1x128xf32>
    %c0_10 = arith.constant 0 : index
    %c1 = arith.constant 1 : index
    %c0_11 = arith.constant 0 : index
    %c0_12 = arith.constant 0 : index
    %17 = vector.load %arg2[%c0_10, %c1, %c0_11, %c0_12] : memref<1x4x16x128xf32, #tpu.memory_space<vmem>>, vector<1x1x16x128xf32>
    %18 = vector.shape_cast %17 : vector<1x1x16x128xf32> to vector<16x128xf32>
    %cst_13 = arith.constant 1.000000e+00 : bf16
    %19 = vector.broadcast %cst_13 : bf16 to vector<16x128xbf16>
    %20 = arith.cmpf oeq, %1, %19 : vector<16x128xbf16>
    %cst_14 = arith.constant 0.000000e+00 : f32
    %21 = vector.broadcast %cst_14 : f32 to vector<16x128xf32>
    %22 = arith.select %20, %18, %21 : vector<16x128xi1>, vector<16x128xf32>
    %cst_15 = arith.constant dense<0.000000e+00> : vector<128xf32>
    %23 = vector.multi_reduction <add>, %22, %cst_15 [0] : vector<16x128xf32> to vector<128xf32>
    %24 = vector.shape_cast %23 : vector<128xf32> to vector<1x128xf32>
    %25 = arith.extui %20 : vector<16x128xi1> to vector<16x128xi32>
    %26 = arith.sitofp %25 : vector<16x128xi32> to vector<16x128xf32>
    %cst_16 = arith.constant dense<0.000000e+00> : vector<128xf32>
    %27 = vector.multi_reduction <add>, %26, %cst_16 [0] : vector<16x128xf32> to vector<128xf32>
    %28 = vector.shape_cast %27 : vector<128xf32> to vector<1x128xf32>
    %29 = arith.mulf %18, %18 : vector<16x128xf32>
    %cst_17 = arith.constant dense<0.000000e+00> : vector<128xf32>
    %30 = vector.multi_reduction <add>, %29, %cst_17 [0] : vector<16x128xf32> to vector<128xf32>
    %31 = vector.shape_cast %30 : vector<128xf32> to vector<1x128xf32>
    %c0_18 = arith.constant 0 : index
    %c2 = arith.constant 2 : index
    %c0_19 = arith.constant 0 : index
    %c0_20 = arith.constant 0 : index
    %32 = vector.load %arg2[%c0_18, %c2, %c0_19, %c0_20] : memref<1x4x16x128xf32, #tpu.memory_space<vmem>>, vector<1x1x16x128xf32>
    %33 = vector.shape_cast %32 : vector<1x1x16x128xf32> to vector<16x128xf32>
    %cst_21 = arith.constant 2.000000e+00 : bf16
    %34 = vector.broadcast %cst_21 : bf16 to vector<16x128xbf16>
    %35 = arith.cmpf oeq, %1, %34 : vector<16x128xbf16>
    %cst_22 = arith.constant 0.000000e+00 : f32
    %36 = vector.broadcast %cst_22 : f32 to vector<16x128xf32>
    %37 = arith.select %35, %33, %36 : vector<16x128xi1>, vector<16x128xf32>
    %cst_23 = arith.constant dense<0.000000e+00> : vector<128xf32>
    %38 = vector.multi_reduction <add>, %37, %cst_23 [0] : vector<16x128xf32> to vector<128xf32>
    %39 = vector.shape_cast %38 : vector<128xf32> to vector<1x128xf32>
    %40 = arith.extui %35 : vector<16x128xi1> to vector<16x128xi32>
    %41 = arith.sitofp %40 : vector<16x128xi32> to vector<16x128xf32>
    %cst_24 = arith.constant dense<0.000000e+00> : vector<128xf32>
    %42 = vector.multi_reduction <add>, %41, %cst_24 [0] : vector<16x128xf32> to vector<128xf32>
    %43 = vector.shape_cast %42 : vector<128xf32> to vector<1x128xf32>
    %44 = arith.mulf %33, %33 : vector<16x128xf32>
    %cst_25 = arith.constant dense<0.000000e+00> : vector<128xf32>
    %45 = vector.multi_reduction <add>, %44, %cst_25 [0] : vector<16x128xf32> to vector<128xf32>
    %46 = vector.shape_cast %45 : vector<128xf32> to vector<1x128xf32>
    %c0_26 = arith.constant 0 : index
    %c3 = arith.constant 3 : index
    %c0_27 = arith.constant 0 : index
    %c0_28 = arith.constant 0 : index
    %47 = vector.load %arg2[%c0_26, %c3, %c0_27, %c0_28] : memref<1x4x16x128xf32, #tpu.memory_space<vmem>>, vector<1x1x16x128xf32>
    %48 = vector.shape_cast %47 : vector<1x1x16x128xf32> to vector<16x128xf32>
    %cst_29 = arith.constant 3.000000e+00 : bf16
    %49 = vector.broadcast %cst_29 : bf16 to vector<16x128xbf16>
    %50 = arith.cmpf oeq, %1, %49 : vector<16x128xbf16>
    %cst_30 = arith.constant 0.000000e+00 : f32
    %51 = vector.broadcast %cst_30 : f32 to vector<16x128xf32>
    %52 = arith.select %50, %48, %51 : vector<16x128xi1>, vector<16x128xf32>
    %cst_31 = arith.constant dense<0.000000e+00> : vector<128xf32>
    %53 = vector.multi_reduction <add>, %52, %cst_31 [0] : vector<16x128xf32> to vector<128xf32>
    %54 = vector.shape_cast %53 : vector<128xf32> to vector<1x128xf32>
    %55 = arith.extui %50 : vector<16x128xi1> to vector<16x128xi32>
    %56 = arith.sitofp %55 : vector<16x128xi32> to vector<16x128xf32>
    %cst_32 = arith.constant dense<0.000000e+00> : vector<128xf32>
    %57 = vector.multi_reduction <add>, %56, %cst_32 [0] : vector<16x128xf32> to vector<128xf32>
    %58 = vector.shape_cast %57 : vector<128xf32> to vector<1x128xf32>
    %59 = arith.mulf %48, %48 : vector<16x128xf32>
    %cst_33 = arith.constant dense<0.000000e+00> : vector<128xf32>
    %60 = vector.multi_reduction <add>, %59, %cst_33 [0] : vector<16x128xf32> to vector<128xf32>
    %61 = vector.shape_cast %60 : vector<128xf32> to vector<1x128xf32>
    %62 = tpu.concatenate %9, %24, %39, %54, %13, %28, %43, %58, %16, %31, %46, %61 in 0 : vector<1x128xf32>, vector<1x128xf32>, vector<1x128xf32>, vector<1x128xf32>, vector<1x128xf32>, vector<1x128xf32>, vector<1x128xf32>, vector<1x128xf32>, vector<1x128xf32>, vector<1x128xf32>, vector<1x128xf32>, vector<1x128xf32> -> vector<12x128xf32>
    %c0_i32 = arith.constant 0 : i32
    %63 = arith.cmpi eq, %arg1, %c0_i32 : i32
    %64 = arith.extui %63 : i1 to i32
    %c0_i32_34 = arith.constant 0 : i32
    %65 = arith.cmpi ne, %64, %c0_i32_34 : i32
    scf.if %65 {
      %cst_41 = arith.constant 0.000000e+00 : f32
      %70 = vector.broadcast %cst_41 : f32 to vector<1x12x128xf32>
      %c0_42 = arith.constant 0 : index
      %c0_43 = arith.constant 0 : index
      %c0_44 = arith.constant 0 : index
      %71 = vector.load %arg4[%c0_42, %c0_43, %c0_44] : memref<1x12x128xf32, #tpu.memory_space<vmem>>, vector<1x12x128xf32>
      tpu.vector_store %arg4[%c0_42, %c0_43, %c0_44], %70 {strides = array<i32>} : memref<1x12x128xf32, #tpu.memory_space<vmem>>, vector<1x12x128xf32>,
    } else {
    }
    %c0_35 = arith.constant 0 : index
    %c0_36 = arith.constant 0 : index
    %c0_37 = arith.constant 0 : index
    %66 = vector.load %arg4[%c0_35, %c0_36, %c0_37] : memref<1x12x128xf32, #tpu.memory_space<vmem>>, vector<1x12x128xf32>
    %67 = vector.shape_cast %62 : vector<12x128xf32> to vector<1x12x128xf32>
    %68 = arith.addf %66, %67 : vector<1x12x128xf32>
    %c0_38 = arith.constant 0 : index
    %c0_39 = arith.constant 0 : index
    %c0_40 = arith.constant 0 : index
    %69 = vector.load %arg4[%c0_38, %c0_39, %c0_40] : memref<1x12x128xf32, #tpu.memory_space<vmem>>, vector<1x12x128xf32>
    tpu.vector_store %arg4[%c0_38, %c0_39, %c0_40], %68 {strides = array<i32>} : memref<1x12x128xf32, #tpu.memory_space<vmem>>, vector<1x12x128xf32>,
    return
  }
  func.func @transform_0(%arg0: i32, %arg1: i32) -> (i32, i32, i32, i32) {
    %c0_i32 = arith.constant 0 : i32
    %c0_i32_0 = arith.constant 0 : i32
    %c0_i32_1 = arith.constant 0 : i32
    return %arg0, %c0_i32, %arg1, %c0_i32_0 : i32, i32, i32, i32
  }
  func.func @transform_1(%arg0: i32, %arg1: i32) -> (i32, i32, i32) {
    %c0_i32 = arith.constant 0 : i32
    %c0_i32_0 = arith.constant 0 : i32
    return %arg0, %arg1, %c0_i32 : i32, i32, i32
  }
  func.func @transform_2(%arg0: i32, %arg1: i32) -> (i32, i32, i32) {
    %c0_i32 = arith.constant 0 : i32
    %c0_i32_0 = arith.constant 0 : i32
    %c0_i32_1 = arith.constant 0 : i32
    return %arg0, %c0_i32, %c0_i32_0 : i32, i32, i32
  }
}

</mosaic_0001>

<llo_original>
// kernel: tpu_custom_call.1
$region0: #{tpu_custom_call.1}
  #allocation0 [shape = 'u32[]', space=smem, size = 0x4, offset = 0x4, fixed_abs, tag = 'smem constant byte address 0x4 - core index']
  #allocation1 [shape = 'u32[72,128]{1,0:T(1,128)}', space=vmem, size = 0x9000, scoped, tag = 'internal scratch']
  %s0 = inlined_call_operand.hbm [shape: f32[2,4,16,128], index: 0, kind: input, shape index: {}]
  %s1 = inlined_call_operand.hbm [shape: bf16[2,16,128], index: 1, kind: input, shape index: {}]
  %s2 = inlined_call_operand.vmem [shape: f32[2,12,128], index: 2, kind: output, shape index: {}]
  %s3 = sld [smem:[#allocation0]]
  $region53: #{tpu_custom_call.1} parent=0
    _
  %s5 = ssub.s32 1, %s3
  %s6 = scalar_select 0, %s5, %s3
  $region1: #{tpu_custom_call.1} parent=0
    #allocation2 [shape = 'u8[65536]{0}', space=vmem, size = 0x10000, scoped, tag = 'input window, operand 0']
    #allocation3 [shape = 's32[2]{0}', space=sflag, size = 0x8, scoped, tag = 'scoped memory for tpu_custom_call.1']
    #allocation4 [shape = 'u8[8192]{0}', space=vmem, size = 0x2000, scoped, tag = 'input window, operand 1']
    #allocation5 [shape = 's32[2]{0}', space=sflag, size = 0x8, scoped, tag = 'scoped memory for tpu_custom_call.1']
    %7 = vsyncpa [#allocation3], 0
    %s8 = scalar_lea.sflag [#allocation3], 1
    %9 = vsyncpa %s8, 0
    %10 = vsyncpa [#allocation5], 0
    %s11 = scalar_lea.sflag [#allocation5], 1
    %12 = vsyncpa %s11, 0
    loop: start=0, step=1, limit=4
    $region2: #{tpu_custom_call.1} parent=1 // loop_pre_header
      _
    $region3: #{tpu_custom_call.1} parent=1 // loop_header
      %s14 = sphi 0, %s18
      %p15 = scmp.ge.s32.totalorder %s14, 4
      %s21 = sphi 0, %s33
      %s22 = sphi 0, %s29
      %s23 = sphi 0, %s21
      %s24 = sphi 0, %s22
      %s25 = sphi 0, %s23
      %s26 = sphi 0, %s24
      %s38 = sphi 0, %s40
      %s41 = sphi 0, %s38
      %s42 = sphi 0, %s41
      %s58 = sphi 0, %s42
      %s66 = sphi 0, %s68
      %s69 = sphi 0, %s66
      %s70 = sphi 0, %s69
      %s86 = sphi 0, %s70
      %s92 = sphi 0, %s94
      %s95 = sphi 0, %s92
      %s96 = sphi 0, %s95
      %s112 = sphi 0, %s96
    $region4: #{tpu_custom_call.1} parent=1 // loop_header_branch
      %17 = sbr.rel (%p15) target = $region8
    $region5: #{tpu_custom_call.1} parent=1 // loop_body
      %s19 = ssub.s32 %s14, 1
      %s20 = ssub.s32 %s14, 2
      %s27 = sadd.s32 1, %s22
      %p28 = scmp.ge.s32.totalorder %s27, 1
      %s29 = scalar_select %p28, 0, %s27
      %s30 = sadd.s32 1, %s21
      %s31 = scalar_select %p28, %s30, %s21
      %p32 = scmp.ge.s32.totalorder %s31, 2
      %s33 = scalar_select %p32, 0, %s31
      %s34 = ssub.s32 %s21, %s33
      %s35 = ssub.s32 %s22, %s29
      %s36 = sor.u32 %s34, %s35
      %p37 = scmp.eq.s32.totalorder %s36, 0
      %s39 = sadd.s32 %s38, 1
      %s40 = scalar_select %p37, %s38, %s39
      %p43 = pneg %p37
      %p44 = scmp.eq.s32.totalorder %s14, 1
      %p45 = por %p43, %p44
      %p46 = scmp.ne.s32.totalorder %s38, %s41
      %p47 = scmp.eq.s32.totalorder %s14, 0
      %p48 = por %p46, %p47
      %p49 = scmp.ne.s32.totalorder %s38, %s41
      %p50 = scmp.eq.s32.totalorder %s19, 1
      %p51 = por %p49, %p50
      %p52 = scmp.ne.s32.totalorder %s41, %s42
      %p53 = scmp.eq.s32.totalorder %s19, 0
      %p54 = por %p52, %p53
      %p55 = scmp.ne.s32.totalorder %s41, %s42
      %p56 = scmp.eq.s32.totalorder %s20, 1
      %p57 = por %p55, %p56
      %p59 = scmp.ne.s32.totalorder %s42, %s58
      %p60 = scmp.eq.s32.totalorder %s20, 0
      %p61 = por %p59, %p60
      %s62 = ssub.s32 %s21, %s33
      %s63 = ssub.s32 %s22, %s29
      %s64 = sor.u32 %s62, %s63
      %p65 = scmp.eq.s32.totalorder %s64, 0
      %s67 = sadd.s32 %s66, 1
      %s68 = scalar_select %p65, %s66, %s67
      %p71 = pneg %p65
      %p72 = scmp.eq.s32.totalorder %s14, 1
      %p73 = por %p71, %p72
      %p74 = scmp.ne.s32.totalorder %s66, %s69
      %p75 = scmp.eq.s32.totalorder %s14, 0
      %p76 = por %p74, %p75
      %p77 = scmp.ne.s32.totalorder %s66, %s69
      %p78 = scmp.eq.s32.totalorder %s19, 1
      %p79 = por %p77, %p78
      %p80 = scmp.ne.s32.totalorder %s69, %s70
      %p81 = scmp.eq.s32.totalorder %s19, 0
      %p82 = por %p80, %p81
      %p83 = scmp.ne.s32.totalorder %s69, %s70
      %p84 = scmp.eq.s32.totalorder %s20, 1
      %p85 = por %p83, %p84
      %p87 = scmp.ne.s32.totalorder %s70, %s86
      %p88 = scmp.eq.s32.totalorder %s20, 0
      %p89 = por %p87, %p88
      %s90 = ssub.s32 %s21, %s33
      %p91 = scmp.eq.s32.totalorder %s90, 0
      %s93 = sadd.s32 %s92, 1
      %s94 = scalar_select %p91, %s92, %s93
      %p97 = pneg %p91
      %p98 = scmp.eq.s32.totalorder %s14, 1
      %p99 = por %p97, %p98
      %p100 = scmp.ne.s32.totalorder %s92, %s95
      %p101 = scmp.eq.s32.totalorder %s14, 0
      %p102 = por %p100, %p101
      %p103 = scmp.ne.s32.totalorder %s92, %s95
      %p104 = scmp.eq.s32.totalorder %s19, 1
      %p105 = por %p103, %p104
      %p106 = scmp.ne.s32.totalorder %s95, %s96
      %p107 = scmp.eq.s32.totalorder %s19, 0
      %p108 = por %p106, %p107
      %p109 = scmp.ne.s32.totalorder %s95, %s96
      %p110 = scmp.eq.s32.totalorder %s20, 1
      %p111 = por %p109, %p110
      %p113 = scmp.ne.s32.totalorder %s96, %s112
      %p114 = scmp.eq.s32.totalorder %s20, 0
      %p115 = por %p113, %p114
      %p116 = scmp.le.s32.totalorder 1, %s14
      %p117 = scmp.lt.s32.totalorder %s14, 3
      %p118 = pnand %p116, %p117
      %p119 = pneg %p118
      // Predicated region
      $region9: #{tpu_custom_call.1} parent=5 // pred_check
        _
      $region10: #{tpu_custom_call.1} parent=5 // pred_check_branch
        %121 = sbr.rel (%p118) target = $region12
      $region11: #{tpu_custom_call.1} parent=5 // pred_region
        %s122 = ssub.s32 %s14, 1
      $region12: #{tpu_custom_call.1} parent=5 // pred_fallthru
        _
      %p123 = scmp.lt.s32.totalorder %s14, 2
      // Predicated region
      $region13: #{tpu_custom_call.1} parent=5 // pred_check
        %p124 = pneg %p123
      $region14: #{tpu_custom_call.1} parent=5 // pred_check_branch
        %126 = sbr.rel (%p124) target = $region16
      $region15: #{tpu_custom_call.1} parent=5 // pred_region
        // Predicated region
        $region17: #{tpu_custom_call.1} parent=15 // pred_check
          %p127 = pneg %p48
        $region18: #{tpu_custom_call.1} parent=15 // pred_check_branch
          %129 = sbr.rel (%p127) target = $region20
        $region19: #{tpu_custom_call.1} parent=15 // pred_region
          %s130 = sand.u32 %s38, 1
          %s131 = scalar_lea.sflag [#allocation3], %s130
          %s132 = sand.u32 %s38, 1
          %s133 = smul.addr %s132, 64
          %s134 = scalar_lea.vmem [#allocation2], %s133
          %s135 = smul.u32 2, %s22
          %137 = vsyncadd %s131, 0
          %s138 = smul.addr %s21, 8
          %s139 = sadd.s32 %s135, %s138
          %s140 = smul.addr %s139, 8
          %s141 = scalar_lea.hbm %s0, %s140
          %s142 = sshll.u32 %s141, 4
          %s143 = int_to_ptr.hbm [resolvable:$true] %s142
          %s144 = sshll.u32 %s134, 4
          %s145 = int_to_ptr.vmem [resolvable:$true] %s144
          %150 = dma.hbm_to_vmem [thread:$0]  %s143, 1024, %s145, %s131, 128, 128, 8
        $region20: #{tpu_custom_call.1} parent=15 // pred_fallthru
          _
        // Predicated region
        $region21: #{tpu_custom_call.1} parent=15 // pred_check
          %p151 = pneg %p76
        $region22: #{tpu_custom_call.1} parent=15 // pred_check_branch
          %153 = sbr.rel (%p151) target = $region24
        $region23: #{tpu_custom_call.1} parent=15 // pred_region
          %s154 = sand.u32 %s66, 1
          %s155 = scalar_lea.sflag [#allocation5], %s154
          %s156 = sand.u32 %s66, 1
          %s157 = smul.addr %s156, 8
          %s158 = scalar_lea.vmem [#allocation4], %s157
          %s159 = smul.u32 2, %s22
          %161 = vsyncadd %s155, 0
          %s162 = smul.addr %s21, 2
          %s163 = sadd.s32 %s159, %s162
          %s164 = smul.addr %s163, 4
          %s165 = scalar_lea.hbm %s1, %s164
          %s166 = sshll.u32 %s165, 4
          %s167 = int_to_ptr.hbm [resolvable:$true] %s166
          %s168 = sshll.u32 %s158, 4
          %s169 = int_to_ptr.vmem [resolvable:$true] %s168
          %174 = dma.hbm_to_vmem [thread:$0]  %s167, 128, %s169, %s155, 64, 64, 4
        $region24: #{tpu_custom_call.1} parent=15 // pred_fallthru
          _
      $region16: #{tpu_custom_call.1} parent=5 // pred_fallthru
        _
      %p175 = scmp.le.s32.totalorder 1, %s14
      %p176 = scmp.lt.s32.totalorder %s14, 3
      %p177 = pnand %p175, %p176
      %p178 = pneg %p177
      // Predicated region
      $region25: #{tpu_custom_call.1} parent=5 // pred_check
        _
      $region26: #{tpu_custom_call.1} parent=5 // pred_check_branch
        %180 = sbr.rel (%p177) target = $region28
      $region27: #{tpu_custom_call.1} parent=5 // pred_region
        %s181 = ssub.s32 %s14, 1
        %s182 = sand.u32 %s41, 1
        %s183 = scalar_lea.sflag [#allocation3], %s182
        %s184 = sand.u32 %s41, 1
        %s185 = smul.addr %s184, 64
        %s186 = scalar_lea.vmem [#allocation2], %s185
        // Predicated region
        $region29: #{tpu_custom_call.1} parent=27 // pred_check
          %p187 = pneg %p54
        $region30: #{tpu_custom_call.1} parent=27 // pred_check_branch
          %189 = sbr.rel (%p187) target = $region32
        $region31: #{tpu_custom_call.1} parent=27 // pred_region
          %191 = dma.done %s183, 1024
        $region32: #{tpu_custom_call.1} parent=27 // pred_fallthru
          _
        %s192 = sand.u32 %s69, 1
        %s193 = scalar_lea.sflag [#allocation5], %s192
        %s194 = sand.u32 %s69, 1
        %s195 = smul.addr %s194, 8
        %s196 = scalar_lea.vmem [#allocation4], %s195
        // Predicated region
        $region33: #{tpu_custom_call.1} parent=27 // pred_check
          %p197 = pneg %p82
        $region34: #{tpu_custom_call.1} parent=27 // pred_check_branch
          %199 = sbr.rel (%p197) target = $region36
        $region35: #{tpu_custom_call.1} parent=27 // pred_region
          %201 = dma.done %s193, 128
        $region36: #{tpu_custom_call.1} parent=27 // pred_fallthru
          _
        %s202 = sand.u32 %s41, 1
        %s203 = scalar_lea.sflag [#allocation3], %s202
        %s204 = sand.u32 %s41, 1
        %s205 = smul.addr %s204, 64
        %s206 = scalar_lea.vmem [#allocation2], %s205
        %p207 = pneg %p54
        %p208 = pneg %p51
        %s209 = sand.u32 %s69, 1
        %s210 = scalar_lea.sflag [#allocation5], %s209
        %s211 = sand.u32 %s69, 1
        %s212 = smul.addr %s211, 8
        %s213 = scalar_lea.vmem [#allocation4], %s212
        %p214 = pneg %p82
        %p215 = pneg %p79
        %p216 = pneg %p108
        %p217 = pneg %p105
        %p218 = scmp.lt.s32.totalorder %s23, 1
        %s219 = scalar_select %p218, %s23, 1
        %s220 = smul.addr %s219, 2
        %s221 = smul.addr %s220, 8
        %s222 = scalar_lea.vmem %s2, %s221
        %s223 = smul.u32 2, %s24
        %s224 = smul.u32 2, %s24
        %p225 = scmp.lt.s32.totalorder %s23, 1
        %s226 = scalar_select %p225, %s23, 1
        %s227 = smul.addr %s226, 2
        %s228 = smul.addr %s227, 8
        %s229 = scalar_lea.vmem %s2, %s228
        %v230 = vld [vmem:[%s196] sm:$0xf]
        %v231 = vld [vmem:[%s196 + $0x4] sm:$0xf]
        %v232 = vld [vmem:[%s186] sm:$0xff]
        %v233 = vld [vmem:[%s186 + $0x8] sm:$0xff]
        %v234 = vunpack.c.l.bf16 %v230
        %v235 = vunpack.c.l.bf16 %v231
        %vm236 = vcmp.eq.f32.partialorder %v234, 0.0
        %vm237 = vcmp.eq.f32.partialorder %v235, 0.0
        %v238 = vsel %vm236, %v232, 0.0
        %v239 = vsel %vm237, %v233, 0.0
        %v240 = vadd.f32 %v238, %v239
        %v241 = vrot.slane %v240, 4
        %v242 = vadd.f32 %v240, %v241
        %v243 = vrot.slane %v242, 2
        %v244 = vadd.f32 %v242, %v243
        %v245 = vrot.slane %v244, 1
        %v246 = vadd.f32 %v244, %v245
        %v247 = vsel %vm236, 1, 0
        %v248 = vsel %vm237, 1, 0
        %v249 = vcvt.s32.f32 %v247
        %v250 = vcvt.s32.f32 %v248
        %v251 = vadd.f32 %v249, %v250
        %v252 = vrot.slane %v251, 4
        %v253 = vadd.f32 %v251, %v252
        %v254 = vrot.slane %v253, 2
        %v255 = vadd.f32 %v253, %v254
        %v256 = vrot.slane %v255, 1
        %v257 = vadd.f32 %v255, %v256
        %v258 = vmul.f32 %v232, %v232
        %v259 = vmul.f32 %v233, %v233
        %v260 = vadd.f32 %v258, %v259
        %v261 = vrot.slane %v260, 4
        %v262 = vadd.f32 %v260, %v261
        %v263 = vrot.slane %v262, 2
        %v264 = vadd.f32 %v262, %v263
        %v265 = vrot.slane %v264, 1
        %v266 = vadd.f32 %v264, %v265
        %s267 = scalar_lea.vmem %s186, 16 [#allocation2]
        %v268 = vld [vmem:[%s267] sm:$0xff]
        %v269 = vld [vmem:[%s267 + $0x8] sm:$0xff]
        %vm270 = vcmp.eq.f32.partialorder %v234, 1.0
        %vm271 = vcmp.eq.f32.partialorder %v235, 1.0
        %v272 = vsel %vm270, %v268, 0.0
        %v273 = vsel %vm271, %v269, 0.0
        %v274 = vadd.f32 %v272, %v273
        %v275 = vrot.slane %v274, 4
        %v276 = vadd.f32 %v274, %v275
        %v277 = vrot.slane %v276, 2
        %v278 = vadd.f32 %v276, %v277
        %v279 = vrot.slane %v278, 1
        %v280 = vadd.f32 %v278, %v279
        %v281 = vsel %vm270, 1, 0
        %v282 = vsel %vm271, 1, 0
        %v283 = vcvt.s32.f32 %v281
        %v284 = vcvt.s32.f32 %v282
        %v285 = vadd.f32 %v283, %v284
        %v286 = vrot.slane %v285, 4
        %v287 = vadd.f32 %v285, %v286
        %v288 = vrot.slane %v287, 2
        %v289 = vadd.f32 %v287, %v288
        %v290 = vrot.slane %v289, 1
        %v291 = vadd.f32 %v289, %v290
        %v292 = vmul.f32 %v268, %v268
        %v293 = vmul.f32 %v269, %v269
        %v294 = vadd.f32 %v292, %v293
        %v295 = vrot.slane %v294, 4
        %v296 = vadd.f32 %v294, %v295
        %v297 = vrot.slane %v296, 2
        %v298 = vadd.f32 %v296, %v297
        %v299 = vrot.slane %v298, 1
        %v300 = vadd.f32 %v298, %v299
        %s301 = scalar_lea.vmem %s186, 32 [#allocation2]
        %v302 = vld [vmem:[%s301] sm:$0xff]
        %v303 = vld [vmem:[%s301 + $0x8] sm:$0xff]
        %vm304 = vcmp.eq.f32.partialorder %v234, 2.0
        %vm305 = vcmp.eq.f32.partialorder %v235, 2.0
        %v306 = vsel %vm304, %v302, 0.0
        %v307 = vsel %vm305, %v303, 0.0
        %v308 = vadd.f32 %v306, %v307
        %v309 = vrot.slane %v308, 4
        %v310 = vadd.f32 %v308, %v309
        %v311 = vrot.slane %v310, 2
        %v312 = vadd.f32 %v310, %v311
        %v313 = vrot.slane %v312, 1
        %v314 = vadd.f32 %v312, %v313
        %v315 = vsel %vm304, 1, 0
        %v316 = vsel %vm305, 1, 0
        %v317 = vcvt.s32.f32 %v315
        %v318 = vcvt.s32.f32 %v316
        %v319 = vadd.f32 %v317, %v318
        %v320 = vrot.slane %v319, 4
        %v321 = vadd.f32 %v319, %v320
        %v322 = vrot.slane %v321, 2
        %v323 = vadd.f32 %v321, %v322
        %v324 = vrot.slane %v323, 1
        %v325 = vadd.f32 %v323, %v324
        %v326 = vmul.f32 %v302, %v302
        %v327 = vmul.f32 %v303, %v303
        %v328 = vadd.f32 %v326, %v327
        %v329 = vrot.slane %v328, 4
        %v330 = vadd.f32 %v328, %v329
        %v331 = vrot.slane %v330, 2
        %v332 = vadd.f32 %v330, %v331
        %v333 = vrot.slane %v332, 1
        %v334 = vadd.f32 %v332, %v333
        %s335 = scalar_lea.vmem %s186, 48 [#allocation2]
        %v336 = vld [vmem:[%s335] sm:$0xff]
        %v337 = vld [vmem:[%s335 + $0x8] sm:$0xff]
        %vm338 = vcmp.eq.f32.partialorder %v234, 3.0
        %vm339 = vcmp.eq.f32.partialorder %v235, 3.0
        %v340 = vsel %vm338, %v336, 0.0
        %v341 = vsel %vm339, %v337, 0.0
        %v342 = vadd.f32 %v340, %v341
        %v343 = vrot.slane %v342, 4
        %v344 = vadd.f32 %v342, %v343
        %v345 = vrot.slane %v344, 2
        %v346 = vadd.f32 %v344, %v345
        %v347 = vrot.slane %v346, 1
        %v348 = vadd.f32 %v346, %v347
        %v349 = vsel %vm338, 1, 0
        %v350 = vsel %vm339, 1, 0
        %v351 = vcvt.s32.f32 %v349
        %v352 = vcvt.s32.f32 %v350
        %v353 = vadd.f32 %v351, %v352
        %v354 = vrot.slane %v353, 4
        %v355 = vadd.f32 %v353, %v354
        %v356 = vrot.slane %v355, 2
        %v357 = vadd.f32 %v355, %v356
        %v358 = vrot.slane %v357, 1
        %v359 = vadd.f32 %v357, %v358
        %v360 = vmul.f32 %v336, %v336
        %v361 = vmul.f32 %v337, %v337
        %v362 = vadd.f32 %v360, %v361
        %v363 = vrot.slane %v362, 4
        %v364 = vadd.f32 %v362, %v363
        %v365 = vrot.slane %v364, 2
        %v366 = vadd.f32 %v364, %v365
        %v367 = vrot.slane %v366, 1
        %v368 = vadd.f32 %v366, %v367
        %vm369 = vcmask 1040384
        %v370 = vsel %vm369, %v246, %v280
        %vm371 = vcmask 1041408
        %v372 = vsel %vm371, %v370, %v314
        %vm373 = vcmask 1042432
        %v374 = vsel %vm373, %v372, %v348
        %vm375 = vcmask 1043456
        %v376 = vsel %vm375, %v374, %v257
        %vm377 = vcmask 1044480
        %v378 = vsel %vm377, %v376, %v291
        %vm379 = vcmask 1045504
        %v380 = vsel %vm379, %v378, %v325
        %vm381 = vcmask 1046528
        %v382 = vsel %vm381, %v380, %v359
        %v383 = vsel %vm369, %v266, %v300
        %v384 = vsel %vm371, %v383, %v334
        %v385 = vsel %vm373, %v384, %v368
        %p386 = scmp.eq.s32.totalorder %s24, 0
        // Predicated region
        $region37: #{tpu_custom_call.1} parent=27 // pred_check
          %p387 = pneg %p386
        $region38: #{tpu_custom_call.1} parent=27 // pred_check_branch
          %389 = sbr.rel (%p387) target = $region40
        $region39: #{tpu_custom_call.1} parent=27 // pred_region
          %390 = vst [vmem:[%s229] sm:$0xff] 0.0
          %391 = vst [vmem:[%s229 + $0x8] sm:$0xf] 0.0
        $region40: #{tpu_custom_call.1} parent=27 // pred_fallthru
          _
        %v392 = vld [vmem:[%s229] sm:$0xff]
        %v393 = vld [vmem:[%s229 + $0x8] sm:$0xf]
        %v394 = vadd.f32 %v392, %v382
        %v395 = vadd.f32 %v393, %v385
        %396 = vst [vmem:[%s229] sm:$0xff] %v394
        %397 = vst [vmem:[%s229 + $0x8] sm:$0xf] %v395
        %p398 = scmp.lt.s32.totalorder %s23, 1
        %s399 = scalar_select %p398, %s23, 1
        %s400 = smul.addr %s399, 2
        %s401 = smul.addr %s400, 8
        %s402 = scalar_lea.vmem %s2, %s401
        // Predicated region
        $region41: #{tpu_custom_call.1} parent=27 // pred_check
          %p403 = pneg %p105
        $region42: #{tpu_custom_call.1} parent=27 // pred_check_branch
          %405 = sbr.rel (%p403) target = $region44
        $region43: #{tpu_custom_call.1} parent=27 // pred_region
          _
        $region44: #{tpu_custom_call.1} parent=27 // pred_fallthru
          _
      $region28: #{tpu_custom_call.1} parent=5 // pred_fallthru
        _
      %p406 = scmp.le.s32.totalorder 2, %s14
      // Predicated region
      $region45: #{tpu_custom_call.1} parent=5 // pred_check
        %p407 = pneg %p406
      $region46: #{tpu_custom_call.1} parent=5 // pred_check_branch
        %409 = sbr.rel (%p407) target = $region48
      $region47: #{tpu_custom_call.1} parent=5 // pred_region
        %s410 = ssub.s32 %s14, 2
        // Predicated region
        $region49: #{tpu_custom_call.1} parent=47 // pred_check
          %p411 = pneg %p111
        $region50: #{tpu_custom_call.1} parent=47 // pred_check_branch
          %413 = sbr.rel (%p411) target = $region52
        $region51: #{tpu_custom_call.1} parent=47 // pred_region
          %p414 = scmp.lt.s32.totalorder %s25, 1
          %s415 = scalar_select %p414, %s25, 1
          %s416 = smul.addr %s415, 2
          %s417 = smul.addr %s416, 8
          %s418 = scalar_lea.vmem %s2, %s417
        $region52: #{tpu_custom_call.1} parent=47 // pred_fallthru
          _
      $region48: #{tpu_custom_call.1} parent=5 // pred_fallthru
        _
    $region6: #{tpu_custom_call.1} parent=1 // loop_footer
      %s18 = sadd.s32 1, %s14
    $region7: #{tpu_custom_call.1} parent=1 // loop_footer_branch
      %13 = sbr.rel target = $region3
    $region8: #{tpu_custom_call.1} parent=1 // loop_exit
      _
    %419 = vsyncpa [#allocation3], 1
    %s420 = scalar_lea.sflag [#allocation3], 1
    %421 = vsyncpa %s420, 1
    %422 = vsyncpa [#allocation5], 1
    %s423 = scalar_lea.sflag [#allocation5], 1
    %424 = vsyncpa %s423, 1

</llo_original>
